<compile_context>
chip_gen: v7x
topology: tpu7x:2x2x1
jax: 0.10.0
libtpu: 0.0.40
codegen_flags: <defaults>
</compile_context>

<pallas_src>
import math

import jax
import jax.numpy as jnp
from jax.experimental import pallas as pl
from jax.experimental.pallas import tpu as pltpu

LANE = 128          # vreg lane width (last dim)
SUBLANE_BF16 = 16   # bf16 packs 2 rows/sublane -> native packed tile is (16, 128)


def _round_up(x, m):
    return ((x + m - 1) // m) * m


# ---------------------------------------------------------------------------
# Kernel
# ---------------------------------------------------------------------------
def qnet_kernel(x_ref, w1_ref, b1_ref, w2_ref, b2_ref, w3_ref, b3_ref, o_ref):
    # x arrives as f32 from HBM (narrow, unpadded lanes); cast to the MXU dtype
    # in-kernel (VPU op) instead of paying an extra XLA convert pass per call.
    x = x_ref[...].astype(w1_ref.dtype)

    # Layer 1: Linear (bf16 MXU, f32 accumulate) + bias + ReLU
    h1 = jnp.dot(x, w1_ref[...], preferred_element_type=jnp.float32)
    h1 = jnp.maximum(h1 + b1_ref[...], 0.0)

    # Layer 2: Linear + bias + ReLU
    h2 = jnp.dot(h1.astype(w2_ref.dtype), w2_ref[...],
                 preferred_element_type=jnp.float32)
    h2 = jnp.maximum(h2 + b2_ref[...], 0.0)

    # Layer 3: Linear + bias (no activation). w3/b3 are lane-padded so the MXU
    # pass is full-width; only the true output columns are stored back.
    out = jnp.dot(h2.astype(w3_ref.dtype), w3_ref[...],
                  preferred_element_type=jnp.float32)
    out = out + b3_ref[...]
    o_ref[...] = out[:, : o_ref.shape[1]].astype(o_ref.dtype)


# ---------------------------------------------------------------------------
# One-time parameter preparation (padding + bf16 cast hoisted out of forward)
# ---------------------------------------------------------------------------
def prepare_params(w1, b1, w2, b2, w3, b3, *, compute_dtype=jnp.bfloat16):
    """Pad/cast parameters ONCE. Returns a dict to pass to qnet_forward."""
    input_nums, hidden_nums = w1.shape
    output_nums = w3.shape[1]

    # Input dim padded only to a sublane multiple (8), not 128 lanes.
    in_p = _round_up(input_nums, 8)
    # Hidden dim lane-aligned; 256-align larger hidden sizes for the 256-wide
    # MXUs on v6e/v7x (still a 128 multiple, so fine on v5e).
    hid_p = _round_up(hidden_nums, 256 if hidden_nums > 128 else LANE)
    # Output dim lane-padded for the in-kernel matmul only; HBM output stays narrow.
    out_p = _round_up(output_nums, LANE)

    def pad2(a, rows, cols, dtype):
        a = a.astype(dtype)
        return jnp.pad(a, ((0, rows - a.shape[0]), (0, cols - a.shape[1])))

    params = {
        "w1": pad2(w1, in_p, hid_p, compute_dtype),
        "w2": pad2(w2, hid_p, hid_p, compute_dtype),
        "w3": pad2(w3, hid_p, out_p, compute_dtype),
        # Biases stay f32 (added to the f32 accumulator).
        "b1": pad2(b1, 1, hid_p, jnp.float32),
        "b2": pad2(b2, 1, hid_p, jnp.float32),
        "b3": pad2(b3, 1, out_p, jnp.float32),
        "input_nums": int(input_nums),
        "output_nums": int(output_nums),
    }
    return params


# ---------------------------------------------------------------------------
# Forward wrapper
# ---------------------------------------------------------------------------
def qnet_forward(x, params, *, tile_b=512):
    """Fused 3-layer MLP forward. x: [batch, input_nums] f32 -> [batch, output_nums] f32."""
    w1_p, b1_p = params["w1"], params["b1"]
    w2_p, b2_p = params["w2"], params["b2"]
    w3_p, b3_p = params["w3"], params["b3"]
    input_nums = params["input_nums"]
    output_nums = params["output_nums"]

    batch = x.shape[0]
    assert x.shape[1] == input_nums
    in_p = w1_p.shape[0]
    hid_p = w1_p.shape[1]
    out_p = w3_p.shape[1]

    # --- batch tiling: multiples of 16 (bf16 sublane packing) ----------------
    tb = _round_up(min(tile_b, _round_up(batch, SUBLANE_BF16)), SUBLANE_BF16)
    # If a single tile would cover a large batch, split it in two so the
    # "parallel" grid axis can use both TensorCores on v7x.
    if batch >= 256 and _round_up(batch, SUBLANE_BF16) <= tb:
        tb = _round_up((batch + 1) // 2, SUBLANE_BF16)
    batch_p = _round_up(batch, tb)
    n_tiles = batch_p // tb

    # --- cheap per-call input padding (rows to batch_p, cols only to 8) ------
    pad_rows = batch_p - batch
    pad_cols = in_p - input_nums
    x_in = jnp.pad(x, ((0, pad_rows), (0, pad_cols))) if (pad_rows or pad_cols) else x

    # --- BlockSpecs -----------------------------------------------------------
    def resident(arr):
        # Same block every grid step -> VMEM-resident; single-buffered to halve
        # the weight footprint (important for v7x's 64 MiB VMEM).
        return pl.BlockSpec(arr.shape, lambda i: (0,) * arr.ndim,
                            pipeline_mode=pl.Buffered(1))

    x_spec = pl.BlockSpec((tb, in_p), lambda i: (i, 0))          # streamed activations
    out_spec = pl.BlockSpec((tb, output_nums), lambda i: (i, 0))  # narrow full-dim store

    # --- VMEM budget / cost estimate -----------------------------------------
    bytes_params = sum(int(a.size) * a.dtype.itemsize
                       for a in (w1_p, b1_p, w2_p, b2_p, w3_p, b3_p))
    bytes_x_tile = 2 * tb * in_p * 4            # double-buffered input tile
    bytes_o_tile = 2 * tb * output_nums * 4     # double-buffered output tile
    bytes_act = 4 * tb * hid_p * 4              # h1/h2 f32 + bf16 copies headroom
    vmem_limit = min(max(int(1.25 * (bytes_params + bytes_x_tile + bytes_o_tile + bytes_act)),
                         32 << 20), 64 << 20)

    flops = 2 * batch_p * (in_p * hid_p + hid_p * hid_p + hid_p * out_p)
    bytes_accessed = (int(x_in.size) * 4 + bytes_params + batch_p * output_nums * 4)
    cost = pl.CostEstimate(flops=int(flops), transcendentals=0,
                           bytes_accessed=int(bytes_accessed))

    out_padded = pl.pallas_call(
        qnet_kernel,
        out_shape=jax.ShapeDtypeStruct((batch_p, output_nums), jnp.float32),
        grid=(n_tiles,),
        in_specs=[
            x_spec,
            resident(w1_p), resident(b1_p),
            resident(w2_p), resident(b2_p),
            resident(w3_p), resident(b3_p),
        ],
        out_specs=out_spec,
        compiler_params=pltpu.CompilerParams(
            dimension_semantics=("parallel",),   # independent batch tiles
            vmem_limit_bytes=vmem_limit,
        ),
        cost_estimate=cost,
    )(x_in, w1_p, b1_p, w2_p, b2_p, w3_p, b3_p)

    return out_padded[:batch] if batch_p != batch else out_padded


# ---------------------------------------------------------------------------
# Parameter init (matches the PyTorch module) + pure-JAX reference
# ---------------------------------------------------------------------------
def xavier_uniform(key, fan_in, fan_out):
    # Matches torch.nn.init.xavier_uniform_ (gain=1.0)
    bound = math.sqrt(6.0 / (fan_in + fan_out))
    return jax.random.uniform(
        key, (fan_in, fan_out), dtype=jnp.float32, minval=-bound, maxval=bound
    )


def make_params(key, input_nums, hidden_nums, output_nums):
    k1, k2, k3 = jax.random.split(key, 3)
    w1 = xavier_uniform(k1, input_nums, hidden_nums)
    b1 = jnp.zeros((1, hidden_nums), jnp.float32)
    w2 = xavier_uniform(k2, hidden_nums, hidden_nums)
    b2 = jnp.zeros((1, hidden_nums), jnp.float32)
    w3 = xavier_uniform(k3, hidden_nums, output_nums)
    b3 = jnp.zeros((1, output_nums), jnp.float32)
    return w1, b1, w2, b2, w3, b3


def qnet_reference(x, w1, b1, w2, b2, w3, b3):
    h1 = jnp.maximum(x @ w1 + b1, 0.0)
    h2 = jnp.maximum(h1 @ w2 + b2, 0.0)
    return h2 @ w3 + b3


if __name__ == "__main__":
    # Small DQN-style shapes: state dim 4 (e.g. CartPole), 2 actions, hidden 32.
    batch, input_nums, hidden_nums, output_nums = 8, 4, 32, 2

    key = jax.random.PRNGKey(0)
    kx, kp, kx2 = jax.random.split(key, 3)
    x = jax.random.normal(kx, (batch, input_nums), dtype=jnp.float32)
    raw_params = make_params(kp, input_nums, hidden_nums, output_nums)

    # One-time padding + bf16 cast (hoisted out of the per-call path).
    params = prepare_params(*raw_params)

    out = jax.block_until_ready(qnet_forward(x, params))
    ref = qnet_reference(x, *raw_params)
    assert out.shape == (batch, output_nums)
    # bf16 MXU operands with f32 accumulation -> relaxed tolerance vs f32 reference.
    assert jnp.allclose(out, ref, atol=2e-2, rtol=2e-2), "mismatch vs reference"

    # Second check: exercise multi-tile batch pipelining (grid > 1) cheaply.
    batch2 = 64
    x2 = jax.random.normal(kx2, (batch2, input_nums), dtype=jnp.float32)
    out2 = jax.block_until_ready(qnet_forward(x2, params, tile_b=16))  # grid=(4,)
    ref2 = qnet_reference(x2, *raw_params)
    assert out2.shape == (batch2, output_nums)
    assert jnp.allclose(out2, ref2, atol=2e-2, rtol=2e-2), "mismatch vs reference (tiled)"

    print("KERNEL_OK")
</pallas_src>

<mosaic_0001>
module attributes {stable_mosaic.version = 11 : i64} {
  func.func @qnet_kernel(%arg0: i32, %arg1: memref<16x8xf32, #tpu.memory_space<vmem>>, %arg2: memref<8x128xbf16, #tpu.memory_space<vmem>>, %arg3: memref<1x128xf32, #tpu.memory_space<vmem>>, %arg4: memref<128x128xbf16, #tpu.memory_space<vmem>>, %arg5: memref<1x128xf32, #tpu.memory_space<vmem>>, %arg6: memref<128x128xbf16, #tpu.memory_space<vmem>>, %arg7: memref<1x128xf32, #tpu.memory_space<vmem>>, %arg8: memref<16x2xf32, #tpu.memory_space<vmem>>) attributes {dimension_semantics = [#tpu.dimension_semantics<parallel>], iteration_bounds = array<i64: 1>, scalar_prefetch = 0 : i64, scratch_operands = 0 : i64, tpu.core_type = #tpu.core_type<tc>, window_params = [{transform_indices = @transform_0, window_bounds = array<i64: 16, 8>}, {pipeline_mode = #tpu.pipeline_mode<synchronous>, transform_indices = @transform_1, window_bounds = array<i64: 8, 128>}, {pipeline_mode = #tpu.pipeline_mode<synchronous>, transform_indices = @transform_2, window_bounds = array<i64: 1, 128>}, {pipeline_mode = #tpu.pipeline_mode<synchronous>, transform_indices = @transform_3, window_bounds = array<i64: 128, 128>}, {pipeline_mode = #tpu.pipeline_mode<synchronous>, transform_indices = @transform_4, window_bounds = array<i64: 1, 128>}, {pipeline_mode = #tpu.pipeline_mode<synchronous>, transform_indices = @transform_5, window_bounds = array<i64: 128, 128>}, {pipeline_mode = #tpu.pipeline_mode<synchronous>, transform_indices = @transform_6, window_bounds = array<i64: 1, 128>}, {transform_indices = @transform_7, window_bounds = array<i64: 16, 2>}]} {
    %c0 = arith.constant 0 : index
    %c0_0 = arith.constant 0 : index
    %0 = vector.load %arg1[%c0, %c0_0] : memref<16x8xf32, #tpu.memory_space<vmem>>, vector<16x8xf32>
    %1 = arith.truncf %0 : vector<16x8xf32> to vector<16x8xbf16>
    %c0_1 = arith.constant 0 : index
    %c0_2 = arith.constant 0 : index
    %2 = vector.load %arg2[%c0_1, %c0_2] : memref<8x128xbf16, #tpu.memory_space<vmem>>, vector<8x128xbf16>
    %cst = arith.constant dense<0.000000e+00> : vector<16x128xf32>
    %3 = tpu.matmul %1, %2, %cst {dimension_numbers = #tpu.dot_dimension_numbers<[1], [0], [0], [1], [0, 0, 1, 1], [], []>} : vector<16x8xbf16>, vector<8x128xbf16>, vector<16x128xf32> -> vector<16x128xf32>
    %c0_3 = arith.constant 0 : index
    %c0_4 = arith.constant 0 : index
    %4 = vector.load %arg3[%c0_3, %c0_4] : memref<1x128xf32, #tpu.memory_space<vmem>>, vector<1x128xf32>
    %5 = vector.broadcast %4 : vector<1x128xf32> to vector<16x128xf32>
    %6 = arith.addf %3, %5 : vector<16x128xf32>
    %cst_5 = arith.constant 0.000000e+00 : f32
    %7 = vector.broadcast %cst_5 : f32 to vector<16x128xf32>
    %8 = arith.maximumf %6, %7 : vector<16x128xf32>
    %9 = arith.truncf %8 : vector<16x128xf32> to vector<16x128xbf16>
    %c0_6 = arith.constant 0 : index
    %c0_7 = arith.constant 0 : index
    %10 = vector.load %arg4[%c0_6, %c0_7] : memref<128x128xbf16, #tpu.memory_space<vmem>>, vector<128x128xbf16>
    %cst_8 = arith.constant dense<0.000000e+00> : vector<16x128xf32>
    %11 = tpu.matmul %9, %10, %cst_8 {dimension_numbers = #tpu.dot_dimension_numbers<[1], [0], [0], [1], [0, 0, 1, 1], [], []>} : vector<16x128xbf16>, vector<128x128xbf16>, vector<16x128xf32> -> vector<16x128xf32>
    %c0_9 = arith.constant 0 : index
    %c0_10 = arith.constant 0 : index
    %12 = vector.load %arg5[%c0_9, %c0_10] : memref<1x128xf32, #tpu.memory_space<vmem>>, vector<1x128xf32>
    %13 = vector.broadcast %12 : vector<1x128xf32> to vector<16x128xf32>
    %14 = arith.addf %11, %13 : vector<16x128xf32>
    %cst_11 = arith.constant 0.000000e+00 : f32
    %15 = vector.broadcast %cst_11 : f32 to vector<16x128xf32>
    %16 = arith.maximumf %14, %15 : vector<16x128xf32>
    %17 = arith.truncf %16 : vector<16x128xf32> to vector<16x128xbf16>
    %c0_12 = arith.constant 0 : index
    %c0_13 = arith.constant 0 : index
    %18 = vector.load %arg6[%c0_12, %c0_13] : memref<128x128xbf16, #tpu.memory_space<vmem>>, vector<128x128xbf16>
    %cst_14 = arith.constant dense<0.000000e+00> : vector<16x128xf32>
    %19 = tpu.matmul %17, %18, %cst_14 {dimension_numbers = #tpu.dot_dimension_numbers<[1], [0], [0], [1], [0, 0, 1, 1], [], []>} : vector<16x128xbf16>, vector<128x128xbf16>, vector<16x128xf32> -> vector<16x128xf32>
    %c0_15 = arith.constant 0 : index
    %c0_16 = arith.constant 0 : index
    %20 = vector.load %arg7[%c0_15, %c0_16] : memref<1x128xf32, #tpu.memory_space<vmem>>, vector<1x128xf32>
    %21 = vector.broadcast %20 : vector<1x128xf32> to vector<16x128xf32>
    %22 = arith.addf %19, %21 : vector<16x128xf32>
    %23 = vector.extract_strided_slice %22 {offsets = [0, 0], sizes = [16, 2], strides = [1, 1]} : vector<16x128xf32> to vector<16x2xf32>
    %c0_17 = arith.constant 0 : index
    %c0_18 = arith.constant 0 : index
    %24 = vector.load %arg8[%c0_17, %c0_18] : memref<16x2xf32, #tpu.memory_space<vmem>>, vector<16x2xf32>
    tpu.vector_store %arg8[%c0_17, %c0_18], %23 {strides = array<i32>} : memref<16x2xf32, #tpu.memory_space<vmem>>, vector<16x2xf32>,
    return
  }
  func.func @transform_0(%arg0: i32) -> (i32, i32) {
    %c0_i32 = arith.constant 0 : i32
    %c0_i32_0 = arith.constant 0 : i32
    return %arg0, %c0_i32 : i32, i32
  }
  func.func @transform_1(%arg0: i32) -> (i32, i32) {
    %c0_i32 = arith.constant 0 : i32
    %c0_i32_0 = arith.constant 0 : i32
    %c0_i32_1 = arith.constant 0 : i32
    return %c0_i32, %c0_i32_0 : i32, i32
  }
  func.func @transform_2(%arg0: i32) -> (i32, i32) {
    %c0_i32 = arith.constant 0 : i32
    %c0_i32_0 = arith.constant 0 : i32
    %c0_i32_1 = arith.constant 0 : i32
    return %c0_i32, %c0_i32_0 : i32, i32
  }
  func.func @transform_3(%arg0: i32) -> (i32, i32) {
    %c0_i32 = arith.constant 0 : i32
    %c0_i32_0 = arith.constant 0 : i32
    %c0_i32_1 = arith.constant 0 : i32
    return %c0_i32, %c0_i32_0 : i32, i32
  }
  func.func @transform_4(%arg0: i32) -> (i32, i32) {
    %c0_i32 = arith.constant 0 : i32
    %c0_i32_0 = arith.constant 0 : i32
    %c0_i32_1 = arith.constant 0 : i32
    return %c0_i32, %c0_i32_0 : i32, i32
  }
  func.func @transform_5(%arg0: i32) -> (i32, i32) {
    %c0_i32 = arith.constant 0 : i32
    %c0_i32_0 = arith.constant 0 : i32
    %c0_i32_1 = arith.constant 0 : i32
    return %c0_i32, %c0_i32_0 : i32, i32
  }
  func.func @transform_6(%arg0: i32) -> (i32, i32) {
    %c0_i32 = arith.constant 0 : i32
    %c0_i32_0 = arith.constant 0 : i32
    %c0_i32_1 = arith.constant 0 : i32
    return %c0_i32, %c0_i32_0 : i32, i32
  }
  func.func @transform_7(%arg0: i32) -> (i32, i32) {
    %c0_i32 = arith.constant 0 : i32
    %c0_i32_0 = arith.constant 0 : i32
    return %arg0, %c0_i32 : i32, i32
  }
}

</mosaic_0001>

<llo_original>
// kernel: tpu_custom_call.1
$region0: #{tpu_custom_call.1}
  #allocation0 [shape = 'u32[]', space=smem, size = 0x4, offset = 0x4, fixed_abs, tag = 'smem constant byte address 0x4 - core index']
  #allocation1 [shape = 'u32[144,128]{1,0:T(1,128)}', space=vmem, size = 0x12000, scoped, tag = 'internal scratch']
  %s0 = inlined_call_operand.vmem [shape: f32[16,8], index: 0, kind: input, shape index: {}]
  %s1 = inlined_call_operand.vmem [shape: bf16[8,128], index: 1, kind: input, shape index: {}]
  %s2 = inlined_call_operand.vmem [shape: f32[1,128], index: 2, kind: input, shape index: {}]
  %s3 = inlined_call_operand.hbm [shape: bf16[128,128], index: 3, kind: input, shape index: {}]
  %s4 = inlined_call_operand.vmem [shape: f32[1,128], index: 4, kind: input, shape index: {}]
  %s5 = inlined_call_operand.hbm [shape: bf16[128,128], index: 5, kind: input, shape index: {}]
  %s6 = inlined_call_operand.vmem [shape: f32[1,128], index: 6, kind: input, shape index: {}]
  %s7 = inlined_call_operand.vmem [shape: f32[16,2], index: 7, kind: output, shape index: {}]
  %s8 = sld [smem:[#allocation0]]
  $region46: #{tpu_custom_call.1} parent=0
    _
  %s10 = ssub.s32 1, %s8
  %s11 = scalar_select 0, %s10, %s8
  $region1: #{tpu_custom_call.1} parent=0
    #allocation2 [shape = 'u8[32768]{0}', space=vmem, size = 0x8000, scoped, tag = 'input window, operand 3, single buffered']
    #allocation3 [shape = 's32[1]{0}', space=sflag, size = 0x4, scoped, tag = 'scoped memory for tpu_custom_call.1']
    #allocation4 [shape = 'u8[32768]{0}', space=vmem, size = 0x8000, scoped, tag = 'input window, operand 5, single buffered']
    #allocation5 [shape = 's32[1]{0}', space=sflag, size = 0x4, scoped, tag = 'scoped memory for tpu_custom_call.1']
    %12 = vsyncpa [#allocation3], 0
    %13 = vsyncpa [#allocation5], 0
    // Predicated region
    $region2: #{tpu_custom_call.1} parent=1 // pred_check
      _
    $region3: #{tpu_custom_call.1} parent=1 // pred_check_branch
      %15 = sbr.rel (0) target = $region5
    $region4: #{tpu_custom_call.1} parent=1 // pred_region
      _
    $region5: #{tpu_custom_call.1} parent=1 // pred_fallthru
      _
    // Predicated region
    $region6: #{tpu_custom_call.1} parent=1 // pred_check
      _
    $region7: #{tpu_custom_call.1} parent=1 // pred_check_branch
      %17 = sbr.rel (0) target = $region9
    $region8: #{tpu_custom_call.1} parent=1 // pred_region
      _
    $region9: #{tpu_custom_call.1} parent=1 // pred_fallthru
      _
    // Predicated region
    $region10: #{tpu_custom_call.1} parent=1 // pred_check
      _
    $region11: #{tpu_custom_call.1} parent=1 // pred_check_branch
      %19 = sbr.rel (0) target = $region13
    $region12: #{tpu_custom_call.1} parent=1 // pred_region
      _
    $region13: #{tpu_custom_call.1} parent=1 // pred_fallthru
      _
    // Predicated region
    $region14: #{tpu_custom_call.1} parent=1 // pred_check
      _
    $region15: #{tpu_custom_call.1} parent=1 // pred_check_branch
      %21 = sbr.rel (0) target = $region17
    $region16: #{tpu_custom_call.1} parent=1 // pred_region
      %s23 = ssub.s32 1024, 1024
      %24 = vsyncadd [#allocation3], %s23
      %s25 = sshll.u32 [#allocation2], 4
      %s26 = int_to_ptr.vmem [resolvable:$true] %s25
      %31 = dma.hbm_to_vmem [thread:$0]  %s3, 1024, %s26, [#allocation3], 64, 64, 4
    $region17: #{tpu_custom_call.1} parent=1 // pred_fallthru
      _
    // Predicated region
    $region18: #{tpu_custom_call.1} parent=1 // pred_check
      _
    $region19: #{tpu_custom_call.1} parent=1 // pred_check_branch
      %33 = sbr.rel (0) target = $region21
    $region20: #{tpu_custom_call.1} parent=1 // pred_region
      _
    $region21: #{tpu_custom_call.1} parent=1 // pred_fallthru
      _
    // Predicated region
    $region22: #{tpu_custom_call.1} parent=1 // pred_check
      _
    $region23: #{tpu_custom_call.1} parent=1 // pred_check_branch
      %35 = sbr.rel (0) target = $region25
    $region24: #{tpu_custom_call.1} parent=1 // pred_region
      %s37 = ssub.s32 1024, 1024
      %38 = vsyncadd [#allocation5], %s37
      %s39 = sshll.u32 [#allocation4], 4
      %s40 = int_to_ptr.vmem [resolvable:$true] %s39
      %45 = dma.hbm_to_vmem [thread:$0]  %s5, 1024, %s40, [#allocation5], 64, 64, 4
    $region25: #{tpu_custom_call.1} parent=1 // pred_fallthru
      _
    // Predicated region
    $region26: #{tpu_custom_call.1} parent=1 // pred_check
      _
    $region27: #{tpu_custom_call.1} parent=1 // pred_check_branch
      %47 = sbr.rel (0) target = $region29
    $region28: #{tpu_custom_call.1} parent=1 // pred_region
      _
    $region29: #{tpu_custom_call.1} parent=1 // pred_fallthru
      _
    // Predicated region
    $region30: #{tpu_custom_call.1} parent=1 // pred_check
      _
    $region31: #{tpu_custom_call.1} parent=1 // pred_check_branch
      %49 = sbr.rel (0) target = $region33
    $region32: #{tpu_custom_call.1} parent=1 // pred_region
      %50 = dma.done [#allocation3], 1024
    $region33: #{tpu_custom_call.1} parent=1 // pred_fallthru
      _
    // Predicated region
    $region34: #{tpu_custom_call.1} parent=1 // pred_check
      _
    $region35: #{tpu_custom_call.1} parent=1 // pred_check_branch
      %52 = sbr.rel (0) target = $region37
    $region36: #{tpu_custom_call.1} parent=1 // pred_region
      %53 = dma.done [#allocation5], 1024
    $region37: #{tpu_custom_call.1} parent=1 // pred_fallthru
      _
    %v55 = vld [vmem:[%s0] sm:$0xff]
    %v56 = vld [vmem:[%s0 + $0x8] sm:$0xff]
    %v57 = vpack.c.bf16 %v56, %v55
    %v58 = vld [vmem:[%s1] sm:$0xf]
    %v59 = vld [vmem:[%s2] sm:$0x1]
    %v61 = vlaneseq
    %v62 = vshrl.u32 %v61, 7
    %v63 = vsub.s32 0, %v62
    %v64 = vrot.slane %v59, %v63
    %vm66 = vcmask 64512
    %v68 = vsel %vm66, %v57, 0
    %vm70 = vcmask 1043456
    %v72 = vsel %vm70, %v58, 0
    %74 = vmatprep.subr.bf16.mxu0 0
    %75 = vmatpush1.bf16.msra.mxu0 %v72
    %76 = vmatprep.subr.bf16.mxu0 0
    %77 = vmatpush1.bf16.msra.mxu0 0
    %78 = vmatprep.subr.bf16.mxu0 0
    %79 = vmatpush1.bf16.msra.mxu0 0
    %80 = vmatprep.subr.bf16.mxu0 0
    %81 = vmatpush1.bf16.msra.mxu0 0
    %82 = vmatprep.subr.bf16.mxu0 0
    %83 = vmatpush1.bf16.msra.mxu0 0
    %84 = vmatprep.subr.bf16.mxu0 0
    %85 = vmatpush1.bf16.msra.mxu0 0
    %86 = vmatprep.subr.bf16.mxu0 0
    %87 = vmatpush1.bf16.msra.mxu0 0
    %88 = vmatprep.subr.bf16.mxu0 0
    %89 = vmatpush1.bf16.msra.mxu0 0
    %90 = vmatprep.subr.bf16.mxu0 0
    %91 = vmatpush1.bf16.msra.mxu0 0
    %92 = vmatprep.subr.bf16.mxu0 0
    %93 = vmatpush1.bf16.msra.mxu0 0
    %94 = vmatprep.subr.bf16.mxu0 0
    %95 = vmatpush1.bf16.msra.mxu0 0
    %96 = vmatprep.subr.bf16.mxu0 0
    %97 = vmatpush1.bf16.msra.mxu0 0
    %98 = vmatprep.subr.bf16.mxu0 0
    %99 = vmatpush1.bf16.msra.mxu0 0
    %100 = vmatprep.subr.bf16.mxu0 0
    %101 = vmatpush1.bf16.msra.mxu0 0
    %102 = vmatprep.subr.bf16.mxu0 0
    %103 = vmatpush1.bf16.msra.mxu0 0
    %104 = vmatprep.subr.bf16.mxu0 0
    %105 = vmatpush1.bf16.msra.mxu0 0
    %106 = vmatprep.mubr.bf16.mxu0 0
    %107 = vmatmul.mubr.bf16.gmra.mrb[0].mxu0 %v68
    %v108 = vpop.f32.mrb[0].mxu0
    %v109 = vadd.f32 %v64, %v108
    %v110 = vpop.f32.mrb[0].mxu0
    %v111 = vpop.f32.mrb[0].mxu0
    %v112 = vadd.f32 %v64, %v111
    %v113 = vpop.f32.mrb[0].mxu0
    %114 = vdwg.mxu0
    %v115 = vmax.f32 %v109, 0.0
    %v116 = vmax.f32 %v112, 0.0
    %v117 = vpack.c.bf16 %v116, %v115
    %v118 = vld [vmem:[#allocation2] sm:$0xf]
    %v119 = vld [vmem:[#allocation2 + $0x4] sm:$0xf]
    %v120 = vld [vmem:[#allocation2 + $0x8] sm:$0xf]
    %v121 = vld [vmem:[#allocation2 + $0xc] sm:$0xf]
    %v122 = vld [vmem:[#allocation2 + $0x10] sm:$0xf]
    %v123 = vld [vmem:[#allocation2 + $0x14] sm:$0xf]
    %v124 = vld [vmem:[#allocation2 + $0x18] sm:$0xf]
    %v125 = vld [vmem:[#allocation2 + $0x1c] sm:$0xf]
    %v126 = vld [vmem:[#allocation2 + $0x20] sm:$0xf]
    %v127 = vld [vmem:[#allocation2 + $0x24] sm:$0xf]
    %v128 = vld [vmem:[#allocation2 + $0x28] sm:$0xf]
    %v129 = vld [vmem:[#allocation2 + $0x2c] sm:$0xf]
    %v130 = vld [vmem:[#allocation2 + $0x30] sm:$0xf]
    %v131 = vld [vmem:[#allocation2 + $0x34] sm:$0xf]
    %v132 = vld [vmem:[#allocation2 + $0x38] sm:$0xf]
    %v133 = vld [vmem:[#allocation2 + $0x3c] sm:$0xf]
    %v134 = vld [vmem:[%s4] sm:$0x1]
    %v136 = vlaneseq
    %v137 = vshrl.u32 %v136, 7
    %v138 = vsub.s32 0, %v137
    %v139 = vrot.slane %v134, %v138
    %v157 = vunpack.c.l.b16 %v118
    %v158 = vunpack.c.l.b16 %v119
    %v159 = vunpack.c.l.b16 %v120
    %v160 = vunpack.c.l.b16 %v121
    %v161 = vunpack.c.l.b16 %v122
    %v162 = vunpack.c.l.b16 %v123
    %v163 = vunpack.c.l.b16 %v124
    %v164 = vunpack.c.l.b16 %v125
    %v165 = vunpack.c.l.b16 %v126
    %v166 = vunpack.c.l.b16 %v127
    %v167 = vunpack.c.l.b16 %v128
    %v168 = vunpack.c.l.b16 %v129
    %v169 = vunpack.c.l.b16 %v130
    %v170 = vunpack.c.l.b16 %v131
    %v171 = vunpack.c.l.b16 %v132
    %v172 = vunpack.c.l.b16 %v133
    %v173 = vpack.c.b16 %v158, %v157
    %v174 = vpack.c.b16 %v160, %v159
    %v175 = vpack.c.b16 %v162, %v161
    %v176 = vpack.c.b16 %v164, %v163
    %v177 = vpack.c.b16 %v166, %v165
    %v178 = vpack.c.b16 %v168, %v167
    %v179 = vpack.c.b16 %v170, %v169
    %v180 = vpack.c.b16 %v172, %v171
    %189 = vmatprep.subr.bf16.mxu0 0
    %190 = vmatpush1.bf16.msra.mxu0 %v173
    %191 = vmatprep.subr.bf16.mxu0 0
    %192 = vmatpush1.bf16.msra.mxu0 %v174
    %193 = vmatprep.subr.bf16.mxu0 0
    %194 = vmatpush1.bf16.msra.mxu0 %v175
    %195 = vmatprep.subr.bf16.mxu0 0
    %196 = vmatpush1.bf16.msra.mxu0 %v176
    %197 = vmatprep.subr.bf16.mxu0 0
    %198 = vmatpush1.bf16.msra.mxu0 %v177
    %199 = vmatprep.subr.bf16.mxu0 0
    %200 = vmatpush1.bf16.msra.mxu0 %v178
    %201 = vmatprep.subr.bf16.mxu0 0
    %202 = vmatpush1.bf16.msra.mxu0 %v179
    %203 = vmatprep.subr.bf16.mxu0 0
    %204 = vmatpush1.bf16.msra.mxu0 %v180
    %205 = vmatprep.subr.bf16.mxu0 0
    %206 = vmatpush1.bf16.msra.mxu0 0
    %207 = vmatprep.subr.bf16.mxu0 0
    %208 = vmatpush1.bf16.msra.mxu0 0
    %209 = vmatprep.subr.bf16.mxu0 0
    %210 = vmatpush1.bf16.msra.mxu0 0
    %211 = vmatprep.subr.bf16.mxu0 0
    %212 = vmatpush1.bf16.msra.mxu0 0
    %213 = vmatprep.subr.bf16.mxu0 0
    %214 = vmatpush1.bf16.msra.mxu0 0
    %215 = vmatprep.subr.bf16.mxu0 0
    %216 = vmatpush1.bf16.msra.mxu0 0
    %217 = vmatprep.subr.bf16.mxu0 0
    %218 = vmatpush1.bf16.msra.mxu0 0
    %219 = vmatprep.subr.bf16.mxu0 0
    %220 = vmatpush1.bf16.msra.mxu0 0
    %221 = vmatprep.mubr.bf16.mxu0 0
    %222 = vmatmul.mubr.bf16.gmra.mrb[0].mxu0 %v117
    %v223 = vpop.f32.mrb[0].mxu0
    %v224 = vadd.f32 %v139, %v223
    %v225 = vpop.f32.mrb[0].mxu0
    %v226 = vpop.f32.mrb[0].mxu0
    %v227 = vadd.f32 %v139, %v226
    %v228 = vpop.f32.mrb[0].mxu0
    %229 = vdwg.mxu0
    %v230 = vmax.f32 %v224, 0.0
    %v231 = vmax.f32 %v227, 0.0
    %v232 = vpack.c.bf16 %v231, %v230
    %v233 = vld [vmem:[#allocation4] sm:$0xf]
    %v234 = vld [vmem:[#allocation4 + $0x4] sm:$0xf]
    %v235 = vld [vmem:[#allocation4 + $0x8] sm:$0xf]
    %v236 = vld [vmem:[#allocation4 + $0xc] sm:$0xf]
    %v237 = vld [vmem:[#allocation4 + $0x10] sm:$0xf]
    %v238 = vld [vmem:[#allocation4 + $0x14] sm:$0xf]
    %v239 = vld [vmem:[#allocation4 + $0x18] sm:$0xf]
    %v240 = vld [vmem:[#allocation4 + $0x1c] sm:$0xf]
    %v241 = vld [vmem:[#allocation4 + $0x20] sm:$0xf]
    %v242 = vld [vmem:[#allocation4 + $0x24] sm:$0xf]
    %v243 = vld [vmem:[#allocation4 + $0x28] sm:$0xf]
    %v244 = vld [vmem:[#allocation4 + $0x2c] sm:$0xf]
    %v245 = vld [vmem:[#allocation4 + $0x30] sm:$0xf]
    %v246 = vld [vmem:[#allocation4 + $0x34] sm:$0xf]
    %v247 = vld [vmem:[#allocation4 + $0x38] sm:$0xf]
    %v248 = vld [vmem:[#allocation4 + $0x3c] sm:$0xf]
    %v249 = vld [vmem:[%s6] sm:$0x1]
    %v251 = vlaneseq
    %v252 = vshrl.u32 %v251, 7
    %v253 = vsub.s32 0, %v252
    %v254 = vrot.slane %v249, %v253
    %v272 = vunpack.c.l.b16 %v233
    %v273 = vunpack.c.l.b16 %v234
    %v274 = vunpack.c.l.b16 %v235
    %v275 = vunpack.c.l.b16 %v236
    %v276 = vunpack.c.l.b16 %v237
    %v277 = vunpack.c.l.b16 %v238
    %v278 = vunpack.c.l.b16 %v239
    %v279 = vunpack.c.l.b16 %v240
    %v280 = vunpack.c.l.b16 %v241
    %v281 = vunpack.c.l.b16 %v242
    %v282 = vunpack.c.l.b16 %v243
    %v283 = vunpack.c.l.b16 %v244
    %v284 = vunpack.c.l.b16 %v245
    %v285 = vunpack.c.l.b16 %v246
    %v286 = vunpack.c.l.b16 %v247
    %v287 = vunpack.c.l.b16 %v248
    %v288 = vpack.c.b16 %v273, %v272
    %v289 = vpack.c.b16 %v275, %v274
    %v290 = vpack.c.b16 %v277, %v276
    %v291 = vpack.c.b16 %v279, %v278
    %v292 = vpack.c.b16 %v281, %v280
    %v293 = vpack.c.b16 %v283, %v282
    %v294 = vpack.c.b16 %v285, %v284
    %v295 = vpack.c.b16 %v287, %v286
    %304 = vmatprep.subr.bf16.mxu0 0
    %305 = vmatpush1.bf16.msra.mxu0 %v288
    %306 = vmatprep.subr.bf16.mxu0 0
    %307 = vmatpush1.bf16.msra.mxu0 %v289
    %308 = vmatprep.subr.bf16.mxu0 0
    %309 = vmatpush1.bf16.msra.mxu0 %v290
    %310 = vmatprep.subr.bf16.mxu0 0
    %311 = vmatpush1.bf16.msra.mxu0 %v291
    %312 = vmatprep.subr.bf16.mxu0 0
    %313 = vmatpush1.bf16.msra.mxu0 %v292
    %314 = vmatprep.subr.bf16.mxu0 0
    %315 = vmatpush1.bf16.msra.mxu0 %v293
    %316 = vmatprep.subr.bf16.mxu0 0
    %317 = vmatpush1.bf16.msra.mxu0 %v294
    %318 = vmatprep.subr.bf16.mxu0 0
    %319 = vmatpush1.bf16.msra.mxu0 %v295
    %320 = vmatprep.subr.bf16.mxu0 0
    %321 = vmatpush1.bf16.msra.mxu0 0
    %322 = vmatprep.subr.bf16.mxu0 0
    %323 = vmatpush1.bf16.msra.mxu0 0
    %324 = vmatprep.subr.bf16.mxu0 0
    %325 = vmatpush1.bf16.msra.mxu0 0
    %326 = vmatprep.subr.bf16.mxu0 0
    %327 = vmatpush1.bf16.msra.mxu0 0
    %328 = vmatprep.subr.bf16.mxu0 0
    %329 = vmatpush1.bf16.msra.mxu0 0
    %330 = vmatprep.subr.bf16.mxu0 0
    %331 = vmatpush1.bf16.msra.mxu0 0
    %332 = vmatprep.subr.bf16.mxu0 0
    %333 = vmatpush1.bf16.msra.mxu0 0
    %334 = vmatprep.subr.bf16.mxu0 0
    %335 = vmatpush1.bf16.msra.mxu0 0
    %336 = vmatprep.mubr.bf16.mxu0 0
    %337 = vmatmul.mubr.bf16.gmra.mrb[0].mxu0 %v232
    %v338 = vpop.f32.mrb[0].mxu0
    %v339 = vadd.f32 %v254, %v338
    %v340 = vpop.f32.mrb[0].mxu0
    %v341 = vpop.f32.mrb[0].mxu0
    %v342 = vadd.f32 %v254, %v341
    %v343 = vpop.f32.mrb[0].mxu0
    %344 = vdwg.mxu0
    %vm345 = vcmask 15360
    %346 = vst.msk [vmem:[%s7] sm:$0xff] %vm345, %v339
    %347 = vst.msk [vmem:[%s7 + $0x8] sm:$0xff] %vm345, %v342
    // Predicated region
    $region38: #{tpu_custom_call.1} parent=1 // pred_check
      _
    $region39: #{tpu_custom_call.1} parent=1 // pred_check_branch
      %349 = sbr.rel (0) target = $region41
    $region40: #{tpu_custom_call.1} parent=1 // pred_region
      _
    $region41: #{tpu_custom_call.1} parent=1 // pred_fallthru
      _
    // Predicated region
    $region42: #{tpu_custom_call.1} parent=1 // pred_check
      _
    $region43: #{tpu_custom_call.1} parent=1 // pred_check_branch
      %351 = sbr.rel (0) target = $region45
    $region44: #{tpu_custom_call.1} parent=1 // pred_region
      _
    $region45: #{tpu_custom_call.1} parent=1 // pred_fallthru
      _
    %352 = vsyncpa [#allocation3], 1
    %353 = vsyncpa [#allocation5], 1

</llo_original>
